<compile_context>
chip_gen: v5e
topology: v5e:2x2
jax: 0.10.0
libtpu: 0.0.40
codegen_flags: <defaults>
</compile_context>

<pallas_src>
import jax
import jax.numpy as jnp
from jax.experimental import pallas as pl
from jax.experimental.pallas import tpu as pltpu

LN_EPS = 1e-12


def adapted_self_output_kernel(
    x_ref,      # (T, H)   hidden_states tile, bf16 (cast in wrapper)
    inp_ref,    # (T, H)   input_tensor tile (caller dtype)
    wd_ref,     # (H, H)   dense weight, bf16, pre-transposed: y = x @ wd + bd
    bd_ref,     # (1, H)   dense bias, f32
    w1_ref,     # (H, Ap)  adapter fc1 weight, bf16 (Ap = adapter_size padded to 128 lanes)
    b1_ref,     # (1, Ap)  adapter fc1 bias, f32 (zero-padded)
    w2_ref,     # (Ap, H)  adapter fc2 weight, bf16 (zero-padded rows)
    b2_ref,     # (1, H)   adapter fc2 bias, f32
    g_ref,      # (1, H)   LayerNorm gamma, f32
    beta_ref,   # (1, H)   LayerNorm beta, f32
    o_ref,      # (T, H)   output tile
):
    # Small parameter loads, hoisted once per grid step.
    bd = bd_ref[...]
    b1 = b1_ref[...]
    b2 = b2_ref[...]
    gamma = g_ref[...]
    beta = beta_ref[...]

    # --- self_output.dense: bf16 MXU matmul, f32 accumulation ---
    h = jnp.dot(x_ref[...], wd_ref[...], preferred_element_type=jnp.float32) + bd
    # self_output.dropout -> identity in eval mode (no-op).

    # --- Adapter: h + relu(fc2(relu(fc1(h))))  (zero-padded lanes contribute exactly 0) ---
    a = jnp.dot(h.astype(jnp.bfloat16), w1_ref[...],
                preferred_element_type=jnp.float32) + b1
    a = jnp.maximum(a, 0.0)
    a = jnp.dot(a.astype(jnp.bfloat16), w2_ref[...],
                preferred_element_type=jnp.float32) + b2
    a = jnp.maximum(a, 0.0)
    h = h + a

    # --- residual with input_tensor, then LayerNorm over the lane axis (f32) ---
    y = h + inp_ref[...].astype(jnp.float32)
    mean = jnp.mean(y, axis=-1, keepdims=True)
    var = jnp.mean(jnp.square(y - mean), axis=-1, keepdims=True)
    yn = (y - mean) * jax.lax.rsqrt(var + LN_EPS)
    o_ref[...] = (yn * gamma + beta).astype(o_ref.dtype)


def _round_up(x, m):
    return ((x + m - 1) // m) * m


def _choose_tile_rows(n_rows, target, *, min_steps=4, min_tile=256):
    """Largest sublane-aligned row tile <= target, shrunk (but not below min_tile) so the grid
    has >= min_steps steps (2 per v7x TensorCore) whenever rows allow it."""
    t = min(_round_up(target, 8), _round_up(n_rows, 8))
    while t > min_tile and pl.cdiv(n_rows, t) < min_steps:
        t = _round_up(t // 2, 8)
    return max(t, 8)


def adapted_self_output(hidden_states, input_tensor, params, *,
                        tile_rows=512, vmem_limit_bytes=48 * 1024 * 1024):
    """hidden_states, input_tensor: [B, S, H] -> output [B, S, H].

    Defaults target v7x (64 MiB physical VMEM).  On v5e/v6e (128 MiB VMEM), tile_rows=1024 and
    vmem_limit_bytes=64<<20 amortize per-step overhead a bit further.
    """
    B, S, H = hidden_states.shape
    out_dtype = hidden_states.dtype
    N = B * S
    T = _choose_tile_rows(N, tile_rows)
    n_steps = pl.cdiv(N, T)
    N_pad = n_steps * T

    # hidden_states is only ever an MXU operand -> cast to bf16 host-side (halves its HBM stream).
    x2 = hidden_states.reshape(N, H).astype(jnp.bfloat16)
    r2 = input_tensor.reshape(N, H)
    if N_pad != N:
        x2 = jnp.pad(x2, ((0, N_pad - N), (0, 0)))
        r2 = jnp.pad(r2, ((0, N_pad - N), (0, 0)))

    # --- parameters: bf16 matmul operands, f32 bias/LN, adapter width lane-padded to 128 ---
    A = params["w_fc1"].shape[1]
    A_pad = _round_up(A, 128)
    w1 = params["w_fc1"]
    b1 = params["b_fc1"]
    w2 = params["w_fc2"]
    if A_pad != A:
        w1 = jnp.pad(w1, ((0, 0), (0, A_pad - A)))
        b1 = jnp.pad(b1, ((0, 0), (0, A_pad - A)))
        w2 = jnp.pad(w2, ((0, A_pad - A), (0, 0)))

    wd = params["w_dense"].astype(jnp.bfloat16)
    w1 = w1.astype(jnp.bfloat16)
    w2 = w2.astype(jnp.bfloat16)
    bd = params["b_dense"].astype(jnp.float32)
    b1 = b1.astype(jnp.float32)
    b2 = params["b_fc2"].astype(jnp.float32)
    g = params["ln_gamma"].astype(jnp.float32)
    beta = params["ln_beta"].astype(jnp.float32)

    flops = int(2 * N_pad * H * H + 4 * N_pad * H * A_pad + 10 * N_pad * H)
    bytes_accessed = int(
        x2.size * x2.dtype.itemsize
        + r2.size * r2.dtype.itemsize
        + N_pad * H * jnp.dtype(out_dtype).itemsize
        + (wd.size + w1.size + w2.size) * 2
        + (bd.size + b1.size + b2.size + g.size + beta.size) * 4
    )
    cost = pl.CostEstimate(flops=flops, transcendentals=int(N_pad),
                           bytes_accessed=bytes_accessed)

    row_spec = pl.BlockSpec((T, H), lambda i: (i, 0))

    def const_spec(shape):
        # Constant index map: block is DMA'd into VMEM once and reused across all grid steps.
        return pl.BlockSpec(shape, lambda i: (0, 0))

    out = pl.pallas_call(
        adapted_self_output_kernel,
        out_shape=jax.ShapeDtypeStruct((N_pad, H), out_dtype),
        grid_spec=pltpu.PrefetchScalarGridSpec(
            num_scalar_prefetch=0,
            grid=(n_steps,),
            in_specs=[
                row_spec,                 # hidden_states (bf16 stream)
                row_spec,                 # input_tensor (residual stream)
                const_spec((H, H)),       # dense W (bf16)
                const_spec((1, H)),       # dense b (f32)
                const_spec((H, A_pad)),   # fc1 W (bf16, lane-padded)
                const_spec((1, A_pad)),   # fc1 b (f32, zero-padded)
                const_spec((A_pad, H)),   # fc2 W (bf16, row-padded)
                const_spec((1, H)),       # fc2 b (f32)
                const_spec((1, H)),       # LN gamma (f32)
                const_spec((1, H)),       # LN beta (f32)
            ],
            out_specs=row_spec,
        ),
        compiler_params=pltpu.CompilerParams(
            dimension_semantics=("parallel",),
            vmem_limit_bytes=vmem_limit_bytes,
        ),
        cost_estimate=cost,
    )(x2, r2, wd, bd, w1, b1, w2, b2, g, beta)

    if N_pad != N:
        out = out[:N]
    return out.reshape(B, S, H)


def init_params(key, hidden_size, adapter_size, dtype=jnp.float32):
    ks = jax.random.split(key, 6)
    scale_h = 1.0 / jnp.sqrt(hidden_size)
    scale_a = 1.0 / jnp.sqrt(adapter_size)
    return {
        # weights stored pre-transposed so the kernel computes y = x @ W + b
        "w_dense": jax.random.normal(ks[0], (hidden_size, hidden_size), dtype) * scale_h,
        "b_dense": jax.random.normal(ks[1], (1, hidden_size), dtype) * 0.02,
        "w_fc1": jax.random.normal(ks[2], (hidden_size, adapter_size), dtype) * scale_h,
        "b_fc1": jax.random.normal(ks[3], (1, adapter_size), dtype) * 0.02,
        "w_fc2": jax.random.normal(ks[4], (adapter_size, hidden_size), dtype) * scale_a,
        "b_fc2": jax.random.normal(ks[5], (1, hidden_size), dtype) * 0.02,
        "ln_gamma": jnp.ones((1, hidden_size), dtype),
        "ln_beta": jnp.zeros((1, hidden_size), dtype),
    }


def _layer_norm(y, gamma, beta):
    mean = jnp.mean(y, axis=-1, keepdims=True)
    var = jnp.mean((y - mean) ** 2, axis=-1, keepdims=True)
    return (y - mean) * jax.lax.rsqrt(var + LN_EPS) * gamma + beta


def reference_f32(hidden_states, input_tensor, p):
    """Pure f32 reference matching the PyTorch module (eval mode) exactly."""
    h = hidden_states @ p["w_dense"] + p["b_dense"]
    a = jnp.maximum(h @ p["w_fc1"] + p["b_fc1"], 0.0)   # ReLU after fc1 (per Adapter.forward)
    a = jnp.maximum(a @ p["w_fc2"] + p["b_fc2"], 0.0)   # ReLU after fc2 (per Adapter.forward)
    h = h + a
    return _layer_norm(h + input_tensor, p["ln_gamma"], p["ln_beta"])


def reference_bf16(hidden_states, input_tensor, p):
    """Reference mirroring the kernel's bf16-operand / f32-accumulate matmuls."""
    def mm(x, w):
        return jnp.dot(x.astype(jnp.bfloat16), w.astype(jnp.bfloat16),
                       preferred_element_type=jnp.float32)
    h = mm(hidden_states, p["w_dense"]) + p["b_dense"]
    a = jnp.maximum(mm(h, p["w_fc1"]) + p["b_fc1"], 0.0)
    a = jnp.maximum(mm(a, p["w_fc2"]) + p["b_fc2"], 0.0)
    h = h + a
    return _layer_norm(h + input_tensor, p["ln_gamma"], p["ln_beta"])


if __name__ == "__main__":
    B, S, H, A = 2, 8, 32, 16
    key = jax.random.PRNGKey(0)
    k_x, k_r, k_p = jax.random.split(key, 3)

    hidden_states = jax.random.normal(k_x, (B, S, H), jnp.float32)
    input_tensor = jax.random.normal(k_r, (B, S, H), jnp.float32)
    params = init_params(k_p, H, A)

    out = adapted_self_output(hidden_states, input_tensor, params)
    out = jax.block_until_ready(out)
    assert out.shape == (B, S, H)

    # Tight check vs a reference that mirrors the kernel's bf16-operand matmuls.
    ref_b = reference_bf16(hidden_states, input_tensor, params)
    assert jnp.allclose(out, ref_b, atol=2e-2, rtol=2e-2), "mismatch vs bf16-mirrored reference"

    # Looser check vs the true f32 module semantics (bf16 MXU operands introduce ~1e-2 deviation).
    ref_f = reference_f32(hidden_states, input_tensor, params)
    assert jnp.allclose(out, ref_f, atol=1e-1, rtol=1e-1), "mismatch vs f32 module reference"

    print("KERNEL_OK")
</pallas_src>

<mosaic_0001>
module attributes {stable_mosaic.version = 11 : i64} {
  func.func @adapted_self_output_kernel(%arg0: i32, %arg1: memref<16x32xbf16, #tpu.memory_space<vmem>>, %arg2: memref<16x32xf32, #tpu.memory_space<vmem>>, %arg3: memref<32x32xbf16, #tpu.memory_space<vmem>>, %arg4: memref<1x32xf32, #tpu.memory_space<vmem>>, %arg5: memref<32x128xbf16, #tpu.memory_space<vmem>>, %arg6: memref<1x128xf32, #tpu.memory_space<vmem>>, %arg7: memref<128x32xbf16, #tpu.memory_space<vmem>>, %arg8: memref<1x32xf32, #tpu.memory_space<vmem>>, %arg9: memref<1x32xf32, #tpu.memory_space<vmem>>, %arg10: memref<1x32xf32, #tpu.memory_space<vmem>>, %arg11: memref<16x32xf32, #tpu.memory_space<vmem>>) attributes {dimension_semantics = [#tpu.dimension_semantics<parallel>], iteration_bounds = array<i64: 1>, scalar_prefetch = 0 : i64, scratch_operands = 0 : i64, tpu.core_type = #tpu.core_type<tc>, window_params = [{transform_indices = @transform_0, window_bounds = array<i64: 16, 32>}, {transform_indices = @transform_1, window_bounds = array<i64: 16, 32>}, {pipeline_mode = #tpu.pipeline_mode<synchronous>, transform_indices = @transform_2, window_bounds = array<i64: 32, 32>}, {pipeline_mode = #tpu.pipeline_mode<synchronous>, transform_indices = @transform_3, window_bounds = array<i64: 1, 32>}, {pipeline_mode = #tpu.pipeline_mode<synchronous>, transform_indices = @transform_4, window_bounds = array<i64: 32, 128>}, {pipeline_mode = #tpu.pipeline_mode<synchronous>, transform_indices = @transform_5, window_bounds = array<i64: 1, 128>}, {pipeline_mode = #tpu.pipeline_mode<synchronous>, transform_indices = @transform_6, window_bounds = array<i64: 128, 32>}, {pipeline_mode = #tpu.pipeline_mode<synchronous>, transform_indices = @transform_7, window_bounds = array<i64: 1, 32>}, {pipeline_mode = #tpu.pipeline_mode<synchronous>, transform_indices = @transform_8, window_bounds = array<i64: 1, 32>}, {pipeline_mode = #tpu.pipeline_mode<synchronous>, transform_indices = @transform_9, window_bounds = array<i64: 1, 32>}, {transform_indices = @transform_10, window_bounds = array<i64: 16, 32>}]} {
    %c0 = arith.constant 0 : index
    %c0_0 = arith.constant 0 : index
    %0 = vector.load %arg4[%c0, %c0_0] : memref<1x32xf32, #tpu.memory_space<vmem>>, vector<1x32xf32>
    %c0_1 = arith.constant 0 : index
    %c0_2 = arith.constant 0 : index
    %1 = vector.load %arg6[%c0_1, %c0_2] : memref<1x128xf32, #tpu.memory_space<vmem>>, vector<1x128xf32>
    %c0_3 = arith.constant 0 : index
    %c0_4 = arith.constant 0 : index
    %2 = vector.load %arg8[%c0_3, %c0_4] : memref<1x32xf32, #tpu.memory_space<vmem>>, vector<1x32xf32>
    %c0_5 = arith.constant 0 : index
    %c0_6 = arith.constant 0 : index
    %3 = vector.load %arg9[%c0_5, %c0_6] : memref<1x32xf32, #tpu.memory_space<vmem>>, vector<1x32xf32>
    %c0_7 = arith.constant 0 : index
    %c0_8 = arith.constant 0 : index
    %4 = vector.load %arg10[%c0_7, %c0_8] : memref<1x32xf32, #tpu.memory_space<vmem>>, vector<1x32xf32>
    %c0_9 = arith.constant 0 : index
    %c0_10 = arith.constant 0 : index
    %5 = vector.load %arg1[%c0_9, %c0_10] : memref<16x32xbf16, #tpu.memory_space<vmem>>, vector<16x32xbf16>
    %c0_11 = arith.constant 0 : index
    %c0_12 = arith.constant 0 : index
    %6 = vector.load %arg3[%c0_11, %c0_12] : memref<32x32xbf16, #tpu.memory_space<vmem>>, vector<32x32xbf16>
    %cst = arith.constant dense<0.000000e+00> : vector<16x32xf32>
    %7 = tpu.matmul %5, %6, %cst {dimension_numbers = #tpu.dot_dimension_numbers<[1], [0], [0], [1], [0, 0, 1, 1], [], []>} : vector<16x32xbf16>, vector<32x32xbf16>, vector<16x32xf32> -> vector<16x32xf32>
    %8 = vector.broadcast %0 : vector<1x32xf32> to vector<16x32xf32>
    %9 = arith.addf %7, %8 : vector<16x32xf32>
    %10 = arith.truncf %9 : vector<16x32xf32> to vector<16x32xbf16>
    %c0_13 = arith.constant 0 : index
    %c0_14 = arith.constant 0 : index
    %11 = vector.load %arg5[%c0_13, %c0_14] : memref<32x128xbf16, #tpu.memory_space<vmem>>, vector<32x128xbf16>
    %cst_15 = arith.constant dense<0.000000e+00> : vector<16x128xf32>
    %12 = tpu.matmul %10, %11, %cst_15 {dimension_numbers = #tpu.dot_dimension_numbers<[1], [0], [0], [1], [0, 0, 1, 1], [], []>} : vector<16x32xbf16>, vector<32x128xbf16>, vector<16x128xf32> -> vector<16x128xf32>
    %13 = vector.broadcast %1 : vector<1x128xf32> to vector<16x128xf32>
    %14 = arith.addf %12, %13 : vector<16x128xf32>
    %cst_16 = arith.constant 0.000000e+00 : f32
    %15 = vector.broadcast %cst_16 : f32 to vector<16x128xf32>
    %16 = arith.maximumf %14, %15 : vector<16x128xf32>
    %17 = arith.truncf %16 : vector<16x128xf32> to vector<16x128xbf16>
    %c0_17 = arith.constant 0 : index
    %c0_18 = arith.constant 0 : index
    %18 = vector.load %arg7[%c0_17, %c0_18] : memref<128x32xbf16, #tpu.memory_space<vmem>>, vector<128x32xbf16>
    %cst_19 = arith.constant dense<0.000000e+00> : vector<16x32xf32>
    %19 = tpu.matmul %17, %18, %cst_19 {dimension_numbers = #tpu.dot_dimension_numbers<[1], [0], [0], [1], [0, 0, 1, 1], [], []>} : vector<16x128xbf16>, vector<128x32xbf16>, vector<16x32xf32> -> vector<16x32xf32>
    %20 = vector.broadcast %2 : vector<1x32xf32> to vector<16x32xf32>
    %21 = arith.addf %19, %20 : vector<16x32xf32>
    %cst_20 = arith.constant 0.000000e+00 : f32
    %22 = vector.broadcast %cst_20 : f32 to vector<16x32xf32>
    %23 = arith.maximumf %21, %22 : vector<16x32xf32>
    %24 = arith.addf %9, %23 : vector<16x32xf32>
    %c0_21 = arith.constant 0 : index
    %c0_22 = arith.constant 0 : index
    %25 = vector.load %arg2[%c0_21, %c0_22] : memref<16x32xf32, #tpu.memory_space<vmem>>, vector<16x32xf32>
    %26 = arith.addf %24, %25 : vector<16x32xf32>
    %cst_23 = arith.constant dense<0.000000e+00> : vector<16xf32>
    %27 = vector.multi_reduction <add>, %26, %cst_23 [1] : vector<16x32xf32> to vector<16xf32>
    %28 = vector.shape_cast %27 : vector<16xf32> to vector<16x1xf32>
    %cst_24 = arith.constant 3.200000e+01 : f32
    %29 = vector.broadcast %cst_24 : f32 to vector<16x1xf32>
    %30 = arith.divf %28, %29 : vector<16x1xf32>
    %31 = vector.broadcast %30 : vector<16x1xf32> to vector<16x32xf32>
    %32 = arith.subf %26, %31 : vector<16x32xf32>
    %33 = arith.mulf %32, %32 : vector<16x32xf32>
    %cst_25 = arith.constant dense<0.000000e+00> : vector<16xf32>
    %34 = vector.multi_reduction <add>, %33, %cst_25 [1] : vector<16x32xf32> to vector<16xf32>
    %35 = vector.shape_cast %34 : vector<16xf32> to vector<16x1xf32>
    %cst_26 = arith.constant 3.200000e+01 : f32
    %36 = vector.broadcast %cst_26 : f32 to vector<16x1xf32>
    %37 = arith.divf %35, %36 : vector<16x1xf32>
    %38 = vector.broadcast %30 : vector<16x1xf32> to vector<16x32xf32>
    %39 = arith.subf %26, %38 : vector<16x32xf32>
    %cst_27 = arith.constant 9.99999996E-13 : f32
    %40 = vector.broadcast %cst_27 : f32 to vector<16x1xf32>
    %41 = arith.addf %37, %40 : vector<16x1xf32>
    %42 = math.rsqrt %41 : vector<16x1xf32>
    %43 = vector.broadcast %42 : vector<16x1xf32> to vector<16x32xf32>
    %44 = arith.mulf %39, %43 : vector<16x32xf32>
    %45 = vector.broadcast %3 : vector<1x32xf32> to vector<16x32xf32>
    %46 = arith.mulf %44, %45 : vector<16x32xf32>
    %47 = vector.broadcast %4 : vector<1x32xf32> to vector<16x32xf32>
    %48 = arith.addf %46, %47 : vector<16x32xf32>
    %c0_28 = arith.constant 0 : index
    %c0_29 = arith.constant 0 : index
    %49 = vector.load %arg11[%c0_28, %c0_29] : memref<16x32xf32, #tpu.memory_space<vmem>>, vector<16x32xf32>
    tpu.vector_store %arg11[%c0_28, %c0_29], %48 {strides = array<i32>} : memref<16x32xf32, #tpu.memory_space<vmem>>, vector<16x32xf32>,
    return
  }
  func.func @transform_0(%arg0: i32) -> (i32, i32) {
    %c0_i32 = arith.constant 0 : i32
    %c0_i32_0 = arith.constant 0 : i32
    return %arg0, %c0_i32 : i32, i32
  }
  func.func @transform_1(%arg0: i32) -> (i32, i32) {
    %c0_i32 = arith.constant 0 : i32
    %c0_i32_0 = arith.constant 0 : i32
    return %arg0, %c0_i32 : i32, i32
  }
  func.func @transform_2(%arg0: i32) -> (i32, i32) {
    %c0_i32 = arith.constant 0 : i32
    %c0_i32_0 = arith.constant 0 : i32
    %c0_i32_1 = arith.constant 0 : i32
    return %c0_i32, %c0_i32_0 : i32, i32
  }
  func.func @transform_3(%arg0: i32) -> (i32, i32) {
    %c0_i32 = arith.constant 0 : i32
    %c0_i32_0 = arith.constant 0 : i32
    %c0_i32_1 = arith.constant 0 : i32
    return %c0_i32, %c0_i32_0 : i32, i32
  }
  func.func @transform_4(%arg0: i32) -> (i32, i32) {
    %c0_i32 = arith.constant 0 : i32
    %c0_i32_0 = arith.constant 0 : i32
    %c0_i32_1 = arith.constant 0 : i32
    return %c0_i32, %c0_i32_0 : i32, i32
  }
  func.func @transform_5(%arg0: i32) -> (i32, i32) {
    %c0_i32 = arith.constant 0 : i32
    %c0_i32_0 = arith.constant 0 : i32
    %c0_i32_1 = arith.constant 0 : i32
    return %c0_i32, %c0_i32_0 : i32, i32
  }
  func.func @transform_6(%arg0: i32) -> (i32, i32) {
    %c0_i32 = arith.constant 0 : i32
    %c0_i32_0 = arith.constant 0 : i32
    %c0_i32_1 = arith.constant 0 : i32
    return %c0_i32, %c0_i32_0 : i32, i32
  }
  func.func @transform_7(%arg0: i32) -> (i32, i32) {
    %c0_i32 = arith.constant 0 : i32
    %c0_i32_0 = arith.constant 0 : i32
    %c0_i32_1 = arith.constant 0 : i32
    return %c0_i32, %c0_i32_0 : i32, i32
  }
  func.func @transform_8(%arg0: i32) -> (i32, i32) {
    %c0_i32 = arith.constant 0 : i32
    %c0_i32_0 = arith.constant 0 : i32
    %c0_i32_1 = arith.constant 0 : i32
    return %c0_i32, %c0_i32_0 : i32, i32
  }
  func.func @transform_9(%arg0: i32) -> (i32, i32) {
    %c0_i32 = arith.constant 0 : i32
    %c0_i32_0 = arith.constant 0 : i32
    %c0_i32_1 = arith.constant 0 : i32
    return %c0_i32, %c0_i32_0 : i32, i32
  }
  func.func @transform_10(%arg0: i32) -> (i32, i32) {
    %c0_i32 = arith.constant 0 : i32
    %c0_i32_0 = arith.constant 0 : i32
    return %arg0, %c0_i32 : i32, i32
  }
}

</mosaic_0001>

<llo_original>
// kernel: tpu_custom_call.1
$region0: #{tpu_custom_call.1}
  #allocation0 [shape = 'u32[]', space=smem, size = 0x4, offset = 0x4, fixed_abs, tag = 'smem constant byte address 0x4 - core index']
  #allocation1 [shape = 'u32[72,128]{1,0:T(1,128)}', space=vmem, size = 0x9000, scoped, tag = 'internal scratch']
  %s0 = inlined_call_operand.vmem [shape: bf16[16,32], index: 0, kind: input, shape index: {}]
  %s1 = inlined_call_operand.vmem [shape: f32[16,32], index: 1, kind: input, shape index: {}]
  %s2 = inlined_call_operand.vmem [shape: bf16[32,32], index: 2, kind: input, shape index: {}]
  %s3 = inlined_call_operand.vmem [shape: f32[1,32], index: 3, kind: input, shape index: {}]
  %s4 = inlined_call_operand.vmem [shape: bf16[32,128], index: 4, kind: input, shape index: {}]
  %s5 = inlined_call_operand.vmem [shape: f32[1,128], index: 5, kind: input, shape index: {}]
  %s6 = inlined_call_operand.vmem [shape: bf16[128,32], index: 6, kind: input, shape index: {}]
  %s7 = inlined_call_operand.vmem [shape: f32[1,32], index: 7, kind: input, shape index: {}]
  %s8 = inlined_call_operand.vmem [shape: f32[1,32], index: 8, kind: input, shape index: {}]
  %s9 = inlined_call_operand.vmem [shape: f32[1,32], index: 9, kind: input, shape index: {}]
  %s10 = inlined_call_operand.hbm [shape: f32[16,32], index: 10, kind: output, shape index: {}]
  %s11 = sld [smem:[#allocation0]]
  $region50: #{tpu_custom_call.1} parent=0
    _
  %s13 = ssub.s32 1, %s11
  %s14 = scalar_select 0, %s13, %s11
  $region1: #{tpu_custom_call.1} parent=0
    #allocation2 [shape = 'u8[8192]{0}', space=vmem, size = 0x2000, scoped, tag = 'output window, operand 0, single buffered']
    #allocation3 [shape = 's32[1]{0}', space=sflag, size = 0x4, scoped, tag = 'scoped memory for tpu_custom_call.1']
    %15 = vsyncpa [#allocation3], 0
    // Predicated region
    $region2: #{tpu_custom_call.1} parent=1 // pred_check
      _
    $region3: #{tpu_custom_call.1} parent=1 // pred_check_branch
      %17 = sbr.rel (0) target = $region5
    $region4: #{tpu_custom_call.1} parent=1 // pred_region
      _
    $region5: #{tpu_custom_call.1} parent=1 // pred_fallthru
      _
    // Predicated region
    $region6: #{tpu_custom_call.1} parent=1 // pred_check
      _
    $region7: #{tpu_custom_call.1} parent=1 // pred_check_branch
      %19 = sbr.rel (0) target = $region9
    $region8: #{tpu_custom_call.1} parent=1 // pred_region
      _
    $region9: #{tpu_custom_call.1} parent=1 // pred_fallthru
      _
    // Predicated region
    $region10: #{tpu_custom_call.1} parent=1 // pred_check
      _
    $region11: #{tpu_custom_call.1} parent=1 // pred_check_branch
      %21 = sbr.rel (0) target = $region13
    $region12: #{tpu_custom_call.1} parent=1 // pred_region
      _
    $region13: #{tpu_custom_call.1} parent=1 // pred_fallthru
      _
    // Predicated region
    $region14: #{tpu_custom_call.1} parent=1 // pred_check
      _
    $region15: #{tpu_custom_call.1} parent=1 // pred_check_branch
      %23 = sbr.rel (0) target = $region17
    $region16: #{tpu_custom_call.1} parent=1 // pred_region
      _
    $region17: #{tpu_custom_call.1} parent=1 // pred_fallthru
      _
    // Predicated region
    $region18: #{tpu_custom_call.1} parent=1 // pred_check
      _
    $region19: #{tpu_custom_call.1} parent=1 // pred_check_branch
      %25 = sbr.rel (0) target = $region21
    $region20: #{tpu_custom_call.1} parent=1 // pred_region
      _
    $region21: #{tpu_custom_call.1} parent=1 // pred_fallthru
      _
    // Predicated region
    $region22: #{tpu_custom_call.1} parent=1 // pred_check
      _
    $region23: #{tpu_custom_call.1} parent=1 // pred_check_branch
      %27 = sbr.rel (0) target = $region25
    $region24: #{tpu_custom_call.1} parent=1 // pred_region
      _
    $region25: #{tpu_custom_call.1} parent=1 // pred_fallthru
      _
    // Predicated region
    $region26: #{tpu_custom_call.1} parent=1 // pred_check
      _
    $region27: #{tpu_custom_call.1} parent=1 // pred_check_branch
      %29 = sbr.rel (0) target = $region29
    $region28: #{tpu_custom_call.1} parent=1 // pred_region
      _
    $region29: #{tpu_custom_call.1} parent=1 // pred_fallthru
      _
    // Predicated region
    $region30: #{tpu_custom_call.1} parent=1 // pred_check
      _
    $region31: #{tpu_custom_call.1} parent=1 // pred_check_branch
      %31 = sbr.rel (0) target = $region33
    $region32: #{tpu_custom_call.1} parent=1 // pred_region
      _
    $region33: #{tpu_custom_call.1} parent=1 // pred_fallthru
      _
    // Predicated region
    $region34: #{tpu_custom_call.1} parent=1 // pred_check
      _
    $region35: #{tpu_custom_call.1} parent=1 // pred_check_branch
      %33 = sbr.rel (0) target = $region37
    $region36: #{tpu_custom_call.1} parent=1 // pred_region
      _
    $region37: #{tpu_custom_call.1} parent=1 // pred_fallthru
      _
    // Predicated region
    $region38: #{tpu_custom_call.1} parent=1 // pred_check
      _
    $region39: #{tpu_custom_call.1} parent=1 // pred_check_branch
      %35 = sbr.rel (0) target = $region41
    $region40: #{tpu_custom_call.1} parent=1 // pred_region
      _
    $region41: #{tpu_custom_call.1} parent=1 // pred_fallthru
      _
    %v37 = vld [vmem:[%s3] sm:$0x1]
    %v38 = vld [vmem:[%s5] sm:$0x1]
    %v39 = vld [vmem:[%s7] sm:$0x1]
    %v40 = vld [vmem:[%s8] sm:$0x1]
    %v41 = vld [vmem:[%s9] sm:$0x1]
    %v42 = vld [vmem:[%s0] sm:$0xf]
    %v43 = vld [vmem:[%s0 + $0x4] sm:$0xf]
    %v44 = vld [vmem:[%s2] sm:$0xf]
    %v45 = vld [vmem:[%s2 + $0x4] sm:$0xf]
    %v46 = vld [vmem:[%s2 + $0x8] sm:$0xf]
    %v47 = vld [vmem:[%s2 + $0xc] sm:$0xf]
    %v49 = vperm.slane %v37, 0
    %v53 = vunpack.c.l.b16 %v42
    %v54 = vunpack.c.l.b16 %v43
    %v55 = vpack.c.b16 %v54, %v53
    %v60 = vunpack.c.l.b16 %v44
    %v61 = vunpack.c.l.b16 %v45
    %v62 = vunpack.c.l.b16 %v46
    %v63 = vunpack.c.l.b16 %v47
    %v64 = vpack.c.b16 %v61, %v60
    %v65 = vpack.c.b16 %v63, %v62
    %vm68 = vcmask 261120
    %v70 = vsel %vm68, %v55, 0
    %72 = vmatpush.bf16.msra.mxu0 0
    %73 = vmatpush.bf16.msra.mxu0 0
    %74 = vmatpush.bf16.msra.mxu0 0
    %75 = vmatpush.bf16.msra.mxu0 0
    %76 = vmatpush.bf16.msra.mxu0 0
    %77 = vmatpush.bf16.msra.mxu0 0
    %78 = vmatpush.bf16.msra.mxu0 %v65
    %79 = vmatpush.bf16.msra.mxu0 %v64
    %80 = vmatmul.bf16.gmra.mxu0 %v70
    %v81 = vpop.f32.mrf.mxu0
    %v82 = vadd.f32 %v49, %v81
    %v83 = vpop.f32.mrf.mxu0
    %v84 = vadd.f32 %v49, %v83
    %85 = vdwg.mxu0
    %v86 = vpack.c.bf16 %v84, %v82
    %v87 = vld [vmem:[%s4] sm:$0xf]
    %v88 = vld [vmem:[%s4 + $0x4] sm:$0xf]
    %v89 = vld [vmem:[%s4 + $0x8] sm:$0xf]
    %v90 = vld [vmem:[%s4 + $0xc] sm:$0xf]
    %v92 = vperm.slane %v38, 0
    %v98 = vunpack.c.l.b16 %v87
    %v99 = vunpack.c.l.b16 %v88
    %v100 = vunpack.c.l.b16 %v89
    %v101 = vunpack.c.l.b16 %v90
    %v102 = vpack.c.b16 %v99, %v98
    %v103 = vpack.c.b16 %v101, %v100
    %v107 = vsel %vm68, %v86, 0
    %109 = vmatpush.bf16.msra.mxu0 0
    %110 = vmatpush.bf16.msra.mxu0 0
    %111 = vmatpush.bf16.msra.mxu0 0
    %112 = vmatpush.bf16.msra.mxu0 0
    %113 = vmatpush.bf16.msra.mxu0 0
    %114 = vmatpush.bf16.msra.mxu0 0
    %115 = vmatpush.bf16.msra.mxu0 %v103
    %116 = vmatpush.bf16.msra.mxu0 %v102
    %117 = vmatmul.bf16.gmra.mxu0 %v107
    %v118 = vpop.f32.mrf.mxu0
    %v119 = vadd.f32 %v92, %v118
    %v120 = vpop.f32.mrf.mxu0
    %v121 = vadd.f32 %v92, %v120
    %122 = vdwg.mxu0
    %v123 = vmax.f32 %v119, 0.0
    %v124 = vmax.f32 %v121, 0.0
    %v125 = vpack.c.bf16 %v124, %v123
    %v126 = vld [vmem:[%s6] sm:$0xf]
    %v127 = vld [vmem:[%s6 + $0x4] sm:$0xf]
    %v128 = vld [vmem:[%s6 + $0x8] sm:$0xf]
    %v129 = vld [vmem:[%s6 + $0xc] sm:$0xf]
    %v130 = vld [vmem:[%s6 + $0x10] sm:$0xf]
    %v131 = vld [vmem:[%s6 + $0x14] sm:$0xf]
    %v132 = vld [vmem:[%s6 + $0x18] sm:$0xf]
    %v133 = vld [vmem:[%s6 + $0x1c] sm:$0xf]
    %v134 = vld [vmem:[%s6 + $0x20] sm:$0xf]
    %v135 = vld [vmem:[%s6 + $0x24] sm:$0xf]
    %v136 = vld [vmem:[%s6 + $0x28] sm:$0xf]
    %v137 = vld [vmem:[%s6 + $0x2c] sm:$0xf]
    %v138 = vld [vmem:[%s6 + $0x30] sm:$0xf]
    %v139 = vld [vmem:[%s6 + $0x34] sm:$0xf]
    %v140 = vld [vmem:[%s6 + $0x38] sm:$0xf]
    %v141 = vld [vmem:[%s6 + $0x3c] sm:$0xf]
    %v143 = vperm.slane %v39, 0
    %v161 = vunpack.c.l.b16 %v126
    %v162 = vunpack.c.l.b16 %v127
    %v163 = vunpack.c.l.b16 %v128
    %v164 = vunpack.c.l.b16 %v129
    %v165 = vunpack.c.l.b16 %v130
    %v166 = vunpack.c.l.b16 %v131
    %v167 = vunpack.c.l.b16 %v132
    %v168 = vunpack.c.l.b16 %v133
    %v169 = vunpack.c.l.b16 %v134
    %v170 = vunpack.c.l.b16 %v135
    %v171 = vunpack.c.l.b16 %v136
    %v172 = vunpack.c.l.b16 %v137
    %v173 = vunpack.c.l.b16 %v138
    %v174 = vunpack.c.l.b16 %v139
    %v175 = vunpack.c.l.b16 %v140
    %v176 = vunpack.c.l.b16 %v141
    %v177 = vpack.c.b16 %v162, %v161
    %v178 = vpack.c.b16 %v164, %v163
    %v179 = vpack.c.b16 %v166, %v165
    %v180 = vpack.c.b16 %v168, %v167
    %v181 = vpack.c.b16 %v170, %v169
    %v182 = vpack.c.b16 %v172, %v171
    %v183 = vpack.c.b16 %v174, %v173
    %v184 = vpack.c.b16 %v176, %v175
    %193 = vmatpush.bf16.msra.mxu0 %v184
    %194 = vmatpush.bf16.msra.mxu0 %v183
    %195 = vmatpush.bf16.msra.mxu0 %v182
    %196 = vmatpush.bf16.msra.mxu0 %v181
    %197 = vmatpush.bf16.msra.mxu0 %v180
    %198 = vmatpush.bf16.msra.mxu0 %v179
    %199 = vmatpush.bf16.msra.mxu0 %v178
    %200 = vmatpush.bf16.msra.mxu0 %v177
    %201 = vmatmul.bf16.gmra.mxu0 %v125
    %v202 = vpop.f32.mrf.mxu0
    %v203 = vadd.f32 %v143, %v202
    %v204 = vpop.f32.mrf.mxu0
    %v205 = vadd.f32 %v143, %v204
    %206 = vdwg.mxu0
    %v207 = vmax.f32 %v203, 0.0
    %v208 = vmax.f32 %v205, 0.0
    %v209 = vadd.f32 %v82, %v207
    %v210 = vadd.f32 %v84, %v208
    %v211 = vld [vmem:[%s1] sm:$0xff]
    %v212 = vld [vmem:[%s1 + $0x8] sm:$0xff]
    %v213 = vadd.f32 %v209, %v211
    %v214 = vadd.f32 %v210, %v212
    %v215 = vsel %vm68, %v213, 0.0
    %216 = vadd.xlane.f32.xlu0 %v215
    %v217 = vpop.xlane.xlu0 %216
    %v218 = vsel %vm68, %v214, 0.0
    %219 = vadd.xlane.f32.xlu0 %v218
    %v220 = vpop.xlane.xlu0 %219
    %v221 = vrcp.pop 32.0
    %v222 = vmul.f32 32.0, %v221
    %v223 = vsub.f32 1.0, %v222
    %v224 = vmul.f32 %v221, %v223
    %v225 = vadd.f32 %v221, %v224
    %vm226 = vweird.f32 %v221
    %v227 = vsel %vm226, %v221, %v225
    %v228 = vmul.f32 %v217, %v227
    %v229 = vmul.f32 %v220, %v227
    %v230 = vsub.f32 %v213, %v228
    %v231 = vsub.f32 %v214, %v229
    %v232 = vmul.f32 %v230, %v230
    %v233 = vmul.f32 %v231, %v231
    %v234 = vsel %vm68, %v232, 0.0
    %235 = vadd.xlane.f32.xlu0 %v234
    %v236 = vpop.xlane.xlu0 %235
    %v237 = vsel %vm68, %v233, 0.0
    %238 = vadd.xlane.f32.xlu0 %v237
    %v239 = vpop.xlane.xlu0 %238
    %v240 = vmul.f32 %v236, %v227
    %v241 = vmul.f32 %v239, %v227
    %v242 = vadd.f32 %v240, 1e-12
    %v243 = vadd.f32 %v241, 1e-12
    %v244 = vrsqrt.pop %v242
    %v245 = vmul.f32 %v244, %v242
    %v246 = vmul.f32 %v245, %v244
    %v247 = vmul.f32 0.5, %v246
    %v248 = vsub.f32 1.5, %v247
    %v249 = vmul.f32 %v244, %v248
    %vm250 = vweird.f32 %v242
    %vm251 = vweird.f32 %v244
    %vm252 = vmor %vm250, %vm251
    %v253 = vsel %vm252, %v244, %v249
    %v254 = vrsqrt.pop %v243
    %v255 = vmul.f32 %v254, %v243
    %v256 = vmul.f32 %v255, %v254
    %v257 = vmul.f32 0.5, %v256
    %v258 = vsub.f32 1.5, %v257
    %v259 = vmul.f32 %v254, %v258
    %vm260 = vweird.f32 %v243
    %vm261 = vweird.f32 %v254
    %vm262 = vmor %vm260, %vm261
    %v263 = vsel %vm262, %v254, %v259
    %v264 = vmul.f32 %v230, %v253
    %v265 = vmul.f32 %v231, %v263
    %v267 = vperm.slane %v40, 0
    %v269 = vmul.f32 %v264, %v267
    %v270 = vmul.f32 %v265, %v267
    %v272 = vperm.slane %v41, 0
    %v274 = vadd.f32 %v269, %v272
    %v275 = vadd.f32 %v270, %v272
    %276 = vst.msk [vmem:[#allocation2] sm:$0xff] %vm68, %v274
    %277 = vst.msk [vmem:[#allocation2 + $0x8] sm:$0xff] %vm68, %v275
    // Predicated region
    $region42: #{tpu_custom_call.1} parent=1 // pred_check
      _
    $region43: #{tpu_custom_call.1} parent=1 // pred_check_branch
      %279 = sbr.rel (0) target = $region45
    $region44: #{tpu_custom_call.1} parent=1 // pred_region
      %281 = vsyncadd [#allocation3], 0
      %s282 = sshll.u32 [#allocation2], 4
      %s283 = int_to_ptr.vmem [resolvable:$true] %s282
      %s284 = sshll.u32 %s10, 4
      %s285 = int_to_ptr.hbm [resolvable:$true] %s284
      %290 = dma.vmem_to_hbm [thread:$0]  %s283, 256, %s285, [#allocation3], 128, 128, 8
    $region45: #{tpu_custom_call.1} parent=1 // pred_fallthru
      _
    // Predicated region
    $region46: #{tpu_custom_call.1} parent=1 // pred_check
      _
    $region47: #{tpu_custom_call.1} parent=1 // pred_check_branch
      %292 = sbr.rel (0) target = $region49
    $region48: #{tpu_custom_call.1} parent=1 // pred_region
      %294 = dma.done [#allocation3], 256
    $region49: #{tpu_custom_call.1} parent=1 // pred_fallthru
      _
    %295 = vsyncpa [#allocation3], 1

</llo_original>
